<compile_context>
chip_gen: v7x
topology: tpu7x:2x2x1
jax: 0.10.0
libtpu: 0.0.40
codegen_flags: <defaults>
</compile_context>

<pallas_src>
import functools
from typing import NamedTuple, Tuple

import jax
import jax.numpy as jnp
from jax.experimental import pallas as pl
from jax.experimental.pallas import tpu as pltpu

WORLD_SIZE = 4          # simulated number of FSDP ranks
BATCH = 8
IN_F = 32
OUT_F = 512


class ShardMeta(NamedTuple):
    """Hashable mirror of shard_tensor()'s metadata (so it can be a jit static arg)."""
    original_numel: int
    original_shape: Tuple[int, ...]
    shard_size: int
    padding: int


# ---------------- host-side glue: mirrors shard_tensor() ----------------
def shard_tensor(param, world_size):
    """Evenly shard a parameter across ranks with zero padding (flat, row-major)."""
    flat = param.reshape(-1)
    numel = int(flat.shape[0])
    padded_numel = (numel + world_size - 1) // world_size * world_size
    padding = padded_numel - numel
    if padding > 0:
        flat = jnp.concatenate([flat, jnp.zeros((padding,), flat.dtype)])
    shard_size = padded_numel // world_size
    shards = flat.reshape(world_size, shard_size)
    meta = ShardMeta(numel, tuple(int(d) for d in param.shape), shard_size, padding)
    return shards, meta


def all_gather_param(shards, meta):
    """Single-device simulation of collectives_all_gather + trim_padding:
    concatenate shards in rank order, trim padding, reshape to original shape."""
    flat = shards.reshape(-1)[: meta.original_numel]
    return flat.reshape(meta.original_shape)


# ---------------- Pallas kernel: fused Linear forward ----------------
def fsdp_linear_kernel(x_ref, wt_ref, b_ref, y_ref):
    # Single MXU matmul: (BATCH, IN_F) @ (IN_F, OUT_F), f32 accumulation,
    # bias added once on the accumulator, lane-dense (OUT_F=512) output store.
    acc = jnp.dot(x_ref[...], wt_ref[...], preferred_element_type=jnp.float32)
    y_ref[...] = (acc + b_ref[...]).astype(y_ref.dtype)


@functools.partial(jax.jit, static_argnames=("w_meta", "b_meta"))
def fsdp_linear_forward(x, wt_shards, b_shards, w_meta, b_meta):
    """gather_all_parameters() + nn.Linear forward, fused in one jitted executable.

    wt_shards are shards of the PRE-TRANSPOSED weight W.T (shape (IN_F, OUT_F)),
    so the gather below is a pure reshape and the kernel RHS needs no transpose.
    """
    w_t = all_gather_param(wt_shards, w_meta)        # (IN_F, OUT_F), f32
    b_full = all_gather_param(b_shards, b_meta)       # (OUT_F,),     f32
    b2d = b_full.reshape(1, -1)                        # (1, OUT_F)

    batch = x.shape[0]
    out_f = w_t.shape[1]

    # No grid: single invocation, whole arrays resident in VMEM (working set
    # ~100 KiB << VMEM on all of v5e/v6e/v7x), no pipeline scaffolding.
    return pl.pallas_call(
        fsdp_linear_kernel,
        out_shape=jax.ShapeDtypeStruct((batch, out_f), x.dtype),
        in_specs=[
            pl.BlockSpec(memory_space=pltpu.MemorySpace.VMEM),
            pl.BlockSpec(memory_space=pltpu.MemorySpace.VMEM),
            pl.BlockSpec(memory_space=pltpu.MemorySpace.VMEM),
        ],
        out_specs=pl.BlockSpec(memory_space=pltpu.MemorySpace.VMEM),
    )(x, w_t, b2d)


if __name__ == "__main__":
    key = jax.random.PRNGKey(0)
    k_w, k_b, k_x = jax.random.split(key, 3)

    # Deterministic parameter init (PyTorch Linear shapes: W (out,in), b (out,))
    bound = 1.0 / (IN_F ** 0.5)
    weight = jax.random.uniform(k_w, (OUT_F, IN_F), jnp.float32, -bound, bound)
    bias = jax.random.uniform(k_b, (OUT_F,), jnp.float32, -bound, bound)
    x = jax.random.normal(k_x, (BATCH, IN_F), jnp.float32)

    # FSDPLayer.__init__ -> shard_parameters()
    # The weight is sharded pre-transposed (IN_F, OUT_F) so the per-forward
    # gather is a pure reshape; forward semantics (y = x @ W.T + b) unchanged.
    w_shards, w_meta = shard_tensor(jnp.transpose(weight), WORLD_SIZE)
    b_shards, b_meta = shard_tensor(bias, WORLD_SIZE)

    # FSDPLayer.forward_op: gather params + Linear forward (jitted Pallas kernel)
    y = fsdp_linear_forward(x, w_shards, b_shards, w_meta, b_meta)
    y = jax.block_until_ready(y)

    # Reference: full-precision gather + Linear in f32 (matches PyTorch nn.Linear)
    w_t_ref = all_gather_param(w_shards, w_meta)       # (IN_F, OUT_F)
    b_ref = all_gather_param(b_shards, b_meta)         # (OUT_F,)
    y_ref = x @ w_t_ref + b_ref[None, :]
    assert y.shape == y_ref.shape
    assert jnp.allclose(y, y_ref, atol=1e-4, rtol=1e-4)

    print("KERNEL_OK")
</pallas_src>

<mosaic_0001>
module attributes {stable_mosaic.version = 11 : i64} {
  func.func @fsdp_linear_kernel(%arg0: memref<8x32xf32, #tpu.memory_space<vmem>>, %arg1: memref<32x512xf32, #tpu.memory_space<vmem>>, %arg2: memref<1x512xf32, #tpu.memory_space<vmem>>, %arg3: memref<8x512xf32, #tpu.memory_space<vmem>>) attributes {dimension_semantics = [], scalar_prefetch = 0 : i64, scratch_operands = 0 : i64, tpu.core_type = #tpu.core_type<tc>} {
    %c0 = arith.constant 0 : index
    %c0_0 = arith.constant 0 : index
    %0 = vector.load %arg0[%c0, %c0_0] : memref<8x32xf32, #tpu.memory_space<vmem>>, vector<8x32xf32>
    %c0_1 = arith.constant 0 : index
    %c0_2 = arith.constant 0 : index
    %1 = vector.load %arg1[%c0_1, %c0_2] : memref<32x512xf32, #tpu.memory_space<vmem>>, vector<32x512xf32>
    %cst = arith.constant dense<0.000000e+00> : vector<8x512xf32>
    %2 = tpu.matmul %0, %1, %cst {dimension_numbers = #tpu.dot_dimension_numbers<[1], [0], [0], [1], [0, 0, 1, 1], [], []>} : vector<8x32xf32>, vector<32x512xf32>, vector<8x512xf32> -> vector<8x512xf32>
    %c0_3 = arith.constant 0 : index
    %c0_4 = arith.constant 0 : index
    %3 = vector.load %arg2[%c0_3, %c0_4] : memref<1x512xf32, #tpu.memory_space<vmem>>, vector<1x512xf32>
    %4 = vector.broadcast %3 : vector<1x512xf32> to vector<8x512xf32>
    %5 = arith.addf %2, %4 : vector<8x512xf32>
    %c0_5 = arith.constant 0 : index
    %c0_6 = arith.constant 0 : index
    %6 = vector.load %arg3[%c0_5, %c0_6] : memref<8x512xf32, #tpu.memory_space<vmem>>, vector<8x512xf32>
    tpu.vector_store %arg3[%c0_5, %c0_6], %5 {strides = array<i32>} : memref<8x512xf32, #tpu.memory_space<vmem>>, vector<8x512xf32>,
    return
  }
}

</mosaic_0001>

<llo_original>
// kernel: fsdp_linear_forward.1
$region0: #{fsdp_linear_forward.1}
  #allocation0 [shape = 'u32[]', space=smem, size = 0x4, offset = 0x4, fixed_abs, tag = 'smem constant byte address 0x4 - core index']
  #allocation1 [shape = 'u32[144,128]{1,0:T(1,128)}', space=vmem, size = 0x12000, scoped, tag = 'internal scratch']
  %s0 = inlined_call_operand.vmem [shape: f32[8,32], index: 0, kind: input, shape index: {}]
  %s1 = inlined_call_operand.vmem [shape: f32[32,512], index: 1, kind: input, shape index: {}]
  %s2 = inlined_call_operand.vmem [shape: f32[1,512], index: 2, kind: input, shape index: {}]
  %s3 = inlined_call_operand.hbm [shape: f32[8,512], index: 3, kind: output, shape index: {}]
  %s4 = sld [smem:[#allocation0]]
  $region22: #{fsdp_linear_forward.1} parent=0
    _
  %s6 = ssub.s32 1, %s4
  %s7 = scalar_select 0, %s6, %s4
  $region1: #{fsdp_linear_forward.1} parent=0
    #allocation2 [shape = 'u8[16384]{0}', space=vmem, size = 0x4000, scoped, tag = 'output window, operand 0, single buffered']
    #allocation3 [shape = 's32[1]{0}', space=sflag, size = 0x4, scoped, tag = 'scoped memory for fsdp_linear_forward.1']
    %8 = vsyncpa [#allocation3], 0
    // Predicated region
    $region2: #{fsdp_linear_forward.1} parent=1 // pred_check
      _
    $region3: #{fsdp_linear_forward.1} parent=1 // pred_check_branch
      %10 = sbr.rel (0) target = $region5
    $region4: #{fsdp_linear_forward.1} parent=1 // pred_region
      _
    $region5: #{fsdp_linear_forward.1} parent=1 // pred_fallthru
      _
    // Predicated region
    $region6: #{fsdp_linear_forward.1} parent=1 // pred_check
      _
    $region7: #{fsdp_linear_forward.1} parent=1 // pred_check_branch
      %12 = sbr.rel (0) target = $region9
    $region8: #{fsdp_linear_forward.1} parent=1 // pred_region
      _
    $region9: #{fsdp_linear_forward.1} parent=1 // pred_fallthru
      _
    // Predicated region
    $region10: #{fsdp_linear_forward.1} parent=1 // pred_check
      _
    $region11: #{fsdp_linear_forward.1} parent=1 // pred_check_branch
      %14 = sbr.rel (0) target = $region13
    $region12: #{fsdp_linear_forward.1} parent=1 // pred_region
      _
    $region13: #{fsdp_linear_forward.1} parent=1 // pred_fallthru
      _
    %v15 = vld [vmem:[%s0] sm:$0xff]
    %v16 = vld [vmem:[%s1] sm:$0xff]
    %v17 = vld [vmem:[%s1 + $0x8] sm:$0xff]
    %v18 = vld [vmem:[%s1 + $0x10] sm:$0xff]
    %v19 = vld [vmem:[%s1 + $0x18] sm:$0xff]
    %v20 = vld [vmem:[%s1 + $0x20] sm:$0xff]
    %v21 = vld [vmem:[%s1 + $0x28] sm:$0xff]
    %v22 = vld [vmem:[%s1 + $0x30] sm:$0xff]
    %v23 = vld [vmem:[%s1 + $0x38] sm:$0xff]
    %v24 = vld [vmem:[%s1 + $0x40] sm:$0xff]
    %v25 = vld [vmem:[%s1 + $0x48] sm:$0xff]
    %v26 = vld [vmem:[%s1 + $0x50] sm:$0xff]
    %v27 = vld [vmem:[%s1 + $0x58] sm:$0xff]
    %v28 = vld [vmem:[%s1 + $0x60] sm:$0xff]
    %v29 = vld [vmem:[%s1 + $0x68] sm:$0xff]
    %v30 = vld [vmem:[%s1 + $0x70] sm:$0xff]
    %v31 = vld [vmem:[%s1 + $0x78] sm:$0xff]
    %v32 = vld [vmem:[%s2] sm:$0xf]
    %v34 = vlaneseq
    %v35 = vshrl.u32 %v34, 7
    %v36 = vsub.s32 0, %v35
    %v37 = vrot.slane %v32, %v36
    %v38 = vlaneseq
    %v39 = vshrl.u32 %v38, 7
    %v40 = vsub.s32 1, %v39
    %v41 = vrot.slane %v32, %v40
    %v42 = vlaneseq
    %v43 = vshrl.u32 %v42, 7
    %v44 = vsub.s32 2, %v43
    %v45 = vrot.slane %v32, %v44
    %v46 = vlaneseq
    %v47 = vshrl.u32 %v46, 7
    %v48 = vsub.s32 3, %v47
    %v49 = vrot.slane %v32, %v48
    %vm54 = vcmask 261120
    %v56 = vsel %vm54, %v15, 0
    %58 = vmatprep.subr.mxu0 %v17
    %59 = vmatpush1.msra.mxu0 %v16
    %60 = vmatprep.subr.mxu0 %v21
    %61 = vmatpush1.msra.mxu0 %v20
    %62 = vmatprep.subr.mxu0 %v25
    %63 = vmatpush1.msra.mxu0 %v24
    %64 = vmatprep.subr.mxu0 %v29
    %65 = vmatpush1.msra.mxu0 %v28
    %66 = vmatprep.subr.mxu0 0.0
    %67 = vmatpush1.msra.mxu0 0.0
    %68 = vmatprep.subr.mxu0 0.0
    %69 = vmatpush1.msra.mxu0 0.0
    %70 = vmatprep.subr.mxu0 0.0
    %71 = vmatpush1.msra.mxu0 0.0
    %72 = vmatprep.subr.mxu0 0.0
    %73 = vmatpush1.msra.mxu0 0.0
    %74 = vmatprep.subr.mxu0 0.0
    %75 = vmatpush1.msra.mxu0 0.0
    %76 = vmatprep.subr.mxu0 0.0
    %77 = vmatpush1.msra.mxu0 0.0
    %78 = vmatprep.subr.mxu0 0.0
    %79 = vmatpush1.msra.mxu0 0.0
    %80 = vmatprep.subr.mxu0 0.0
    %81 = vmatpush1.msra.mxu0 0.0
    %82 = vmatprep.subr.mxu0 0.0
    %83 = vmatpush1.msra.mxu0 0.0
    %84 = vmatprep.subr.mxu0 0.0
    %85 = vmatpush1.msra.mxu0 0.0
    %86 = vmatprep.subr.mxu0 0.0
    %87 = vmatpush1.msra.mxu0 0.0
    %88 = vmatprep.subr.mxu0 0.0
    %89 = vmatpush1.msra.mxu0 0.0
    %90 = vmatprep.subr.mxu0 0.0
    %91 = vmatpush1.msra.mxu0 0.0
    %92 = vmatprep.subr.mxu0 0.0
    %93 = vmatpush1.msra.mxu0 0.0
    %94 = vmatprep.subr.mxu0 0.0
    %95 = vmatpush1.msra.mxu0 0.0
    %96 = vmatprep.subr.mxu0 0.0
    %97 = vmatpush1.msra.mxu0 0.0
    %98 = vmatprep.subr.mxu0 0.0
    %99 = vmatpush1.msra.mxu0 0.0
    %100 = vmatprep.subr.mxu0 0.0
    %101 = vmatpush1.msra.mxu0 0.0
    %102 = vmatprep.subr.mxu0 0.0
    %103 = vmatpush1.msra.mxu0 0.0
    %104 = vmatprep.subr.mxu0 0.0
    %105 = vmatpush1.msra.mxu0 0.0
    %106 = vmatprep.subr.mxu0 0.0
    %107 = vmatpush1.msra.mxu0 0.0
    %108 = vmatprep.subr.mxu0 0.0
    %109 = vmatpush1.msra.mxu0 0.0
    %110 = vmatprep.subr.mxu0 0.0
    %111 = vmatpush1.msra.mxu0 0.0
    %112 = vmatprep.subr.mxu0 0.0
    %113 = vmatpush1.msra.mxu0 0.0
    %114 = vmatprep.subr.mxu0 0.0
    %115 = vmatpush1.msra.mxu0 0.0
    %116 = vmatprep.subr.mxu0 0.0
    %117 = vmatpush1.msra.mxu0 0.0
    %118 = vmatprep.subr.mxu0 0.0
    %119 = vmatpush1.msra.mxu0 0.0
    %120 = vmatprep.subr.mxu0 0.0
    %121 = vmatpush1.msra.mxu0 0.0
    %122 = vmatprep.mubr.f32.mxu0 0.0
    %123 = vmatmul.mubr.f32.gmra.mrb[0].mxu0 %v56
    %v124 = vpop.f32.mrb[0].mxu0
    %v125 = vadd.f32 %v37, %v124
    %v126 = vpop.f32.mrb[0].mxu0
    %v127 = vadd.f32 %v41, %v126
    %128 = vdwg.mxu0
    %129 = vmatprep.subr.mxu0 %v19
    %130 = vmatpush1.msra.mxu0 %v18
    %131 = vmatprep.subr.mxu0 %v23
    %132 = vmatpush1.msra.mxu0 %v22
    %133 = vmatprep.subr.mxu0 %v27
    %134 = vmatpush1.msra.mxu0 %v26
    %135 = vmatprep.subr.mxu0 %v31
    %136 = vmatpush1.msra.mxu0 %v30
    %137 = vmatprep.subr.mxu0 0.0
    %138 = vmatpush1.msra.mxu0 0.0
    %139 = vmatprep.subr.mxu0 0.0
    %140 = vmatpush1.msra.mxu0 0.0
    %141 = vmatprep.subr.mxu0 0.0
    %142 = vmatpush1.msra.mxu0 0.0
    %143 = vmatprep.subr.mxu0 0.0
    %144 = vmatpush1.msra.mxu0 0.0
    %145 = vmatprep.subr.mxu0 0.0
    %146 = vmatpush1.msra.mxu0 0.0
    %147 = vmatprep.subr.mxu0 0.0
    %148 = vmatpush1.msra.mxu0 0.0
    %149 = vmatprep.subr.mxu0 0.0
    %150 = vmatpush1.msra.mxu0 0.0
    %151 = vmatprep.subr.mxu0 0.0
    %152 = vmatpush1.msra.mxu0 0.0
    %153 = vmatprep.subr.mxu0 0.0
    %154 = vmatpush1.msra.mxu0 0.0
    %155 = vmatprep.subr.mxu0 0.0
    %156 = vmatpush1.msra.mxu0 0.0
    %157 = vmatprep.subr.mxu0 0.0
    %158 = vmatpush1.msra.mxu0 0.0
    %159 = vmatprep.subr.mxu0 0.0
    %160 = vmatpush1.msra.mxu0 0.0
    %161 = vmatprep.subr.mxu0 0.0
    %162 = vmatpush1.msra.mxu0 0.0
    %163 = vmatprep.subr.mxu0 0.0
    %164 = vmatpush1.msra.mxu0 0.0
    %165 = vmatprep.subr.mxu0 0.0
    %166 = vmatpush1.msra.mxu0 0.0
    %167 = vmatprep.subr.mxu0 0.0
    %168 = vmatpush1.msra.mxu0 0.0
    %169 = vmatprep.subr.mxu0 0.0
    %170 = vmatpush1.msra.mxu0 0.0
    %171 = vmatprep.subr.mxu0 0.0
    %172 = vmatpush1.msra.mxu0 0.0
    %173 = vmatprep.subr.mxu0 0.0
    %174 = vmatpush1.msra.mxu0 0.0
    %175 = vmatprep.subr.mxu0 0.0
    %176 = vmatpush1.msra.mxu0 0.0
    %177 = vmatprep.subr.mxu0 0.0
    %178 = vmatpush1.msra.mxu0 0.0
    %179 = vmatprep.subr.mxu0 0.0
    %180 = vmatpush1.msra.mxu0 0.0
    %181 = vmatprep.subr.mxu0 0.0
    %182 = vmatpush1.msra.mxu0 0.0
    %183 = vmatprep.subr.mxu0 0.0
    %184 = vmatpush1.msra.mxu0 0.0
    %185 = vmatprep.subr.mxu0 0.0
    %186 = vmatpush1.msra.mxu0 0.0
    %187 = vmatprep.subr.mxu0 0.0
    %188 = vmatpush1.msra.mxu0 0.0
    %189 = vmatprep.subr.mxu0 0.0
    %190 = vmatpush1.msra.mxu0 0.0
    %191 = vmatprep.subr.mxu0 0.0
    %192 = vmatpush1.msra.mxu0 0.0
    %193 = vmatprep.mubr.f32.mxu0 0.0
    %194 = vmatmul.mubr.f32.gmra.mrb[0].mxu0 %v56
    %v195 = vpop.f32.mrb[0].mxu0
    %v196 = vadd.f32 %v45, %v195
    %v197 = vpop.f32.mrb[0].mxu0
    %v198 = vadd.f32 %v49, %v197
    %199 = vdwg.mxu0
    %200 = vst [vmem:[#allocation2] sm:$0xff] %v125
    %201 = vst [vmem:[#allocation2 + $0x8] sm:$0xff] %v127
    %202 = vst [vmem:[#allocation2 + $0x10] sm:$0xff] %v196
    %203 = vst [vmem:[#allocation2 + $0x18] sm:$0xff] %v198
    // Predicated region
    $region14: #{fsdp_linear_forward.1} parent=1 // pred_check
      _
    $region15: #{fsdp_linear_forward.1} parent=1 // pred_check_branch
      %205 = sbr.rel (0) target = $region17
    $region16: #{fsdp_linear_forward.1} parent=1 // pred_region
      %s207 = ssub.s32 512, 512
      %208 = vsyncadd [#allocation3], %s207
      %s210 = sshll.u32 [#allocation2], 4
      %s211 = int_to_ptr.vmem [resolvable:$true] %s210
      %213 = dma.vmem_to_hbm [thread:$0]  %s211, 512, %s3, [#allocation3]
    $region17: #{fsdp_linear_forward.1} parent=1 // pred_fallthru
      _
    // Predicated region
    $region18: #{fsdp_linear_forward.1} parent=1 // pred_check
      _
    $region19: #{fsdp_linear_forward.1} parent=1 // pred_check_branch
      %215 = sbr.rel (0) target = $region21
    $region20: #{fsdp_linear_forward.1} parent=1 // pred_region
      %216 = dma.done [#allocation3], 512
    $region21: #{fsdp_linear_forward.1} parent=1 // pred_fallthru
      _
    %217 = vsyncpa [#allocation3], 1

</llo_original>
